<compile_context>
chip_gen: v5e
topology: v5e:2x2
jax: 0.10.0
libtpu: 0.0.40
codegen_flags: <defaults>
</compile_context>

<pallas_src>
import functools

import jax
import jax.numpy as jnp
from jax.experimental import pallas as pl
from jax.experimental.pallas import tpu as pltpu


def _round_hidden(dim: int, hidden_dim, multiple_of: int) -> int:
    """Replicates the PyTorch __init__ hidden_dim computation."""
    if hidden_dim is None:
        hidden_dim = dim * 4
        hidden_dim = int(2 * hidden_dim / 3)
        hidden_dim = multiple_of * ((hidden_dim + multiple_of - 1) // multiple_of)
    return hidden_dim


def _round_up(x: int, m: int) -> int:
    return ((x + m - 1) // m) * m


def _device_kind() -> str:
    try:
        return jax.devices()[0].device_kind.lower()
    except Exception:
        return ""


def _device_tiling(M: int, hidden: int, itemsize: int):
    """Pick (tm, th, vmem_limit_bytes) for the local TPU generation."""
    kind = _device_kind()
    if "v7" in kind:
        # 64 MiB VMEM per TC: smaller th halves weight double-buffers, keep
        # scoped VMEM well below capacity for compiler scratch headroom.
        tm, th, vmem = 768, 256, 56 * 1024 * 1024
    elif "v6" in kind:
        tm, th, vmem = 1024, 512, 100 * 1024 * 1024
    elif "v5" in kind:
        tm, th, vmem = 512, 512, 100 * 1024 * 1024
    else:
        tm, th, vmem = 256, 256, 64 * 1024 * 1024

    sub = 16 if itemsize < 4 else 8          # sublane packing granularity
    tm = min(tm, max(sub, _round_up(M, sub)))  # never pad rows beyond need
    th = min(th, max(128, _round_up(hidden, 128)))
    if "v7" in kind and M >= 2 * sub:
        # Keep >= 2 row tiles so the "parallel" m axis feeds both TensorCores.
        tm = min(tm, max(sub, _round_up((M + 1) // 2, sub)))
    return tm, th, vmem


def _mlp_kernel(x_ref, w1_ref, w3_ref, w2_ref, o_ref, acc_ref):
    # x_ref:   (tm, dim)      row tile (resident across the k axis)
    # w1_ref:  (dim, th)      W1 column slice for hidden block k
    # w3_ref:  (dim, th)      W3 column slice for hidden block k
    # w2_ref:  (th, dim)      W2 row slice for hidden block k
    # o_ref:   (tm, dim)      output tile (revisited across k)
    # acc_ref: (tm, dim) f32  VMEM accumulator scratch
    k = pl.program_id(1)

    x = x_ref[...]
    h1 = jnp.dot(x, w1_ref[...], preferred_element_type=jnp.float32)  # (tm, th)
    h3 = jnp.dot(x, w3_ref[...], preferred_element_type=jnp.float32)  # (tm, th)

    # SiLU gate in f32 (sigmoid goes to the EUP slot).
    g = (h1 * jax.nn.sigmoid(h1)) * h3

    # Cast the gated activations back to the operand dtype (bf16 on v6e/v7x)
    # for the second MXU matmul; accumulate in f32.
    part = jnp.dot(g.astype(w2_ref.dtype), w2_ref[...],
                   preferred_element_type=jnp.float32)

    @pl.when(k == 0)
    def _first():
        acc_ref[...] = part          # direct write: no zero-fill + re-read

    @pl.when(k != 0)
    def _accumulate():
        acc_ref[...] += part

    @pl.when(k == pl.num_programs(1) - 1)
    def _finalize():
        o_ref[...] = acc_ref[...].astype(o_ref.dtype)


@functools.partial(jax.jit, static_argnames=("tm", "th", "vmem_limit_bytes"))
def mlp_forward(x, w1_t, w3_t, w2_t, *, tm=None, th=None, vmem_limit_bytes=None):
    """x: (B, S, dim). w1_t/w3_t: (dim, hidden). w2_t: (hidden, dim).

    Weights are expected pre-transposed to (in, out) layout and ideally already
    cast to the compute dtype at weight-load time (the astype below is a
    traced fallback and is a no-op when dtypes already match).  Compute uses
    x.dtype operands with f32 accumulation; pass bf16 on v6e/v7x for full MXU
    rate.
    """
    B, S, dim = x.shape
    hidden = w1_t.shape[1]
    dtype = x.dtype
    itemsize = jnp.dtype(dtype).itemsize
    M = B * S

    if tm is None or th is None or vmem_limit_bytes is None:
        a_tm, a_th, a_vmem = _device_tiling(M, hidden, itemsize)
        tm = a_tm if tm is None else tm
        th = a_th if th is None else th
        vmem_limit_bytes = a_vmem if vmem_limit_bytes is None else vmem_limit_bytes

    sub = 16 if itemsize < 4 else 8
    assert tm % sub == 0, "tm must respect sublane packing (8 f32 / 16 bf16)"
    assert th % 128 == 0, "th must be a multiple of the 128-lane width"

    grid_m = pl.cdiv(M, tm)
    grid_k = pl.cdiv(hidden, th)
    m_pad = grid_m * tm
    h_pad = grid_k * th

    # Cast weights only if needed (should be done once at load time).
    if w1_t.dtype != dtype:
        w1_t = w1_t.astype(dtype)
    if w3_t.dtype != dtype:
        w3_t = w3_t.astype(dtype)
    if w2_t.dtype != dtype:
        w2_t = w2_t.astype(dtype)

    x2d = x.reshape(M, dim)
    if m_pad != M:
        # TODO(synk): a masked tail store in the finalize branch would avoid
        # materializing this padded copy of x for ragged M.
        x2d = jnp.pad(x2d, ((0, m_pad - M), (0, 0)))
    if h_pad != hidden:
        # Padded hidden cols/rows contribute exactly zero to the output.
        w1_t = jnp.pad(w1_t, ((0, 0), (0, h_pad - hidden)))
        w3_t = jnp.pad(w3_t, ((0, 0), (0, h_pad - hidden)))
        w2_t = jnp.pad(w2_t, ((0, h_pad - hidden), (0, 0)))

    weight_bytes = (w1_t.size + w3_t.size + w2_t.size) * itemsize
    cost = pl.CostEstimate(
        flops=6 * m_pad * dim * h_pad,                 # 3 matmuls, 2*m*d*h each
        transcendentals=m_pad * h_pad,                 # sigmoid
        bytes_accessed=(x2d.size + m_pad * dim) * itemsize
        + grid_m * weight_bytes,                       # weights re-streamed per row tile
    )

    # Deeper weight buffering only pays off when the per-step weight DMA is
    # exposed (decode-sized M) and there are enough k-steps to pipeline; skip
    # on v7x where the extra buffer eats the tight 64 MiB VMEM budget.
    deep_weights = (grid_m == 1) and (grid_k >= 3) and ("v7" not in _device_kind())

    def _wspec(shape, imap):
        if deep_weights:
            return pl.BlockSpec(shape, imap, pipeline_mode=pl.Buffered(3))
        return pl.BlockSpec(shape, imap)

    out2d = pl.pallas_call(
        _mlp_kernel,
        out_shape=jax.ShapeDtypeStruct((m_pad, dim), dtype),
        grid_spec=pltpu.PrefetchScalarGridSpec(
            num_scalar_prefetch=0,
            grid=(grid_m, grid_k),
            in_specs=[
                pl.BlockSpec((tm, dim), lambda i, k: (i, 0)),   # x row tile
                _wspec((dim, th), lambda i, k: (0, k)),         # W1 column slice
                _wspec((dim, th), lambda i, k: (0, k)),         # W3 column slice
                _wspec((th, dim), lambda i, k: (k, 0)),         # W2 row slice
            ],
            out_specs=pl.BlockSpec((tm, dim), lambda i, k: (i, 0)),
            scratch_shapes=[pltpu.VMEM((tm, dim), jnp.float32)],
        ),
        compiler_params=pltpu.CompilerParams(
            dimension_semantics=("parallel", "arbitrary"),
            vmem_limit_bytes=vmem_limit_bytes,
        ),
        cost_estimate=cost,
    )(x2d, w1_t, w3_t, w2_t)

    out2d = out2d[:M]
    # Dropout: module is evaluated in inference mode here -> identity.
    # TODO(synk): training-mode dropout would need pltpu.prng_seed +
    # pltpu.prng_random_bits to build the keep mask inside the kernel.
    return out2d.reshape(B, S, dim)


if __name__ == "__main__":
    # Small shapes consistent with the module.
    batch, seq = 2, 8
    dim = 64
    multiple_of = 32
    dropout_p = 0.0  # inference / identity

    hidden_dim = _round_hidden(dim, None, multiple_of)  # -> 192

    key = jax.random.PRNGKey(0)
    kx, k1, k2, k3 = jax.random.split(key, 4)

    x = jax.random.normal(kx, (batch, seq, dim), dtype=jnp.float32)

    # Deterministic "Linear(bias=False)" weights; stored transposed
    # (in_features, out_features) so the kernel computes y = x @ W^T directly.
    scale1 = 1.0 / (dim ** 0.5)
    scale2 = 1.0 / (hidden_dim ** 0.5)
    w1_t = jax.random.uniform(k1, (dim, hidden_dim), jnp.float32, -scale1, scale1)
    w3_t = jax.random.uniform(k3, (dim, hidden_dim), jnp.float32, -scale1, scale1)
    w2_t = jax.random.uniform(k2, (hidden_dim, dim), jnp.float32, -scale2, scale2)

    # f32 reference.
    h = x.reshape(-1, dim)
    ref = (jax.nn.silu(h @ w1_t) * (h @ w3_t)) @ w2_t

    # 1) Auto-picked, device-dependent tiles (capped to the toy problem size).
    out = mlp_forward(x, w1_t, w3_t, w2_t)
    jax.block_until_ready(out)
    assert jnp.allclose(out.reshape(-1, dim), ref, atol=1e-5, rtol=1e-5), \
        "f32 mismatch (auto tiles)"

    # 2) Explicit small tiles exercising row padding (M=16 -> 128) and the
    #    hidden-axis accumulation path (hidden 192 -> padded 256 -> 2 k-blocks).
    out2 = mlp_forward(x, w1_t, w3_t, w2_t, tm=128, th=128)
    jax.block_until_ready(out2)
    assert jnp.allclose(out2.reshape(-1, dim), ref, atol=1e-5, rtol=1e-5), \
        "f32 mismatch (explicit tiles)"

    # 3) bf16 operand path (what v6e/v7x should run): looser tolerance vs an
    #    f32 reference computed from the bf16-rounded inputs.
    xb = x.astype(jnp.bfloat16)
    w1b = w1_t.astype(jnp.bfloat16)
    w3b = w3_t.astype(jnp.bfloat16)
    w2b = w2_t.astype(jnp.bfloat16)
    out_b = mlp_forward(xb, w1b, w3b, w2b, tm=128, th=128)
    jax.block_until_ready(out_b)
    hb = xb.astype(jnp.float32).reshape(-1, dim)
    ref_b = (jax.nn.silu(hb @ w1b.astype(jnp.float32)) *
             (hb @ w3b.astype(jnp.float32))) @ w2b.astype(jnp.float32)
    assert jnp.allclose(out_b.reshape(-1, dim).astype(jnp.float32), ref_b,
                        atol=3e-2, rtol=3e-2), "bf16 mismatch"

    print("KERNEL_OK")
</pallas_src>

<mosaic_0001>
module attributes {stable_mosaic.version = 11 : i64} {
  func.func @_mlp_kernel(%arg0: i32, %arg1: i32, %arg2: memref<16x64xf32, #tpu.memory_space<vmem>>, %arg3: memref<64x256xf32, #tpu.memory_space<vmem>>, %arg4: memref<64x256xf32, #tpu.memory_space<vmem>>, %arg5: memref<256x64xf32, #tpu.memory_space<vmem>>, %arg6: memref<16x64xf32, #tpu.memory_space<vmem>>, %arg7: memref<16x64xf32, #tpu.memory_space<vmem>>) attributes {dimension_semantics = [#tpu.dimension_semantics<parallel>, #tpu.dimension_semantics<arbitrary>], iteration_bounds = array<i64: 1, 1>, scalar_prefetch = 0 : i64, scratch_operands = 1 : i64, tpu.core_type = #tpu.core_type<tc>, window_params = [{transform_indices = @transform_0, window_bounds = array<i64: 16, 64>}, {transform_indices = @transform_1, window_bounds = array<i64: 64, 256>}, {transform_indices = @transform_2, window_bounds = array<i64: 64, 256>}, {transform_indices = @transform_3, window_bounds = array<i64: 256, 64>}, {transform_indices = @transform_4, window_bounds = array<i64: 16, 64>}]} {
    %c0 = arith.constant 0 : index
    %c0_0 = arith.constant 0 : index
    %0 = vector.load %arg2[%c0, %c0_0] : memref<16x64xf32, #tpu.memory_space<vmem>>, vector<16x64xf32>
    %c0_1 = arith.constant 0 : index
    %c0_2 = arith.constant 0 : index
    %1 = vector.load %arg3[%c0_1, %c0_2] : memref<64x256xf32, #tpu.memory_space<vmem>>, vector<64x256xf32>
    %cst = arith.constant dense<0.000000e+00> : vector<16x256xf32>
    %2 = tpu.matmul %0, %1, %cst {dimension_numbers = #tpu.dot_dimension_numbers<[1], [0], [0], [1], [0, 0, 1, 1], [], []>} : vector<16x64xf32>, vector<64x256xf32>, vector<16x256xf32> -> vector<16x256xf32>
    %c0_3 = arith.constant 0 : index
    %c0_4 = arith.constant 0 : index
    %3 = vector.load %arg4[%c0_3, %c0_4] : memref<64x256xf32, #tpu.memory_space<vmem>>, vector<64x256xf32>
    %cst_5 = arith.constant dense<0.000000e+00> : vector<16x256xf32>
    %4 = tpu.matmul %0, %3, %cst_5 {dimension_numbers = #tpu.dot_dimension_numbers<[1], [0], [0], [1], [0, 0, 1, 1], [], []>} : vector<16x64xf32>, vector<64x256xf32>, vector<16x256xf32> -> vector<16x256xf32>
    %5 = arith.negf %2 : vector<16x256xf32>
    %6 = math.exp %5 : vector<16x256xf32>
    %cst_6 = arith.constant 1.000000e+00 : f32
    %7 = vector.broadcast %cst_6 : f32 to vector<16x256xf32>
    %8 = arith.addf %7, %6 : vector<16x256xf32>
    %9 = arith.divf %7, %8 : vector<16x256xf32>
    %10 = arith.mulf %2, %9 : vector<16x256xf32>
    %11 = arith.mulf %10, %4 : vector<16x256xf32>
    %c0_7 = arith.constant 0 : index
    %c0_8 = arith.constant 0 : index
    %12 = vector.load %arg5[%c0_7, %c0_8] : memref<256x64xf32, #tpu.memory_space<vmem>>, vector<256x64xf32>
    %cst_9 = arith.constant dense<0.000000e+00> : vector<16x64xf32>
    %13 = tpu.matmul %11, %12, %cst_9 {dimension_numbers = #tpu.dot_dimension_numbers<[1], [0], [0], [1], [0, 0, 1, 1], [], []>} : vector<16x256xf32>, vector<256x64xf32>, vector<16x64xf32> -> vector<16x64xf32>
    %c0_i32 = arith.constant 0 : i32
    %14 = arith.cmpi eq, %arg1, %c0_i32 : i32
    %15 = arith.extui %14 : i1 to i32
    %c0_i32_10 = arith.constant 0 : i32
    %16 = arith.cmpi ne, %15, %c0_i32_10 : i32
    scf.if %16 {
      %c0_15 = arith.constant 0 : index
      %c0_16 = arith.constant 0 : index
      %23 = vector.load %arg7[%c0_15, %c0_16] : memref<16x64xf32, #tpu.memory_space<vmem>>, vector<16x64xf32>
      tpu.vector_store %arg7[%c0_15, %c0_16], %13 {strides = array<i32>} : memref<16x64xf32, #tpu.memory_space<vmem>>, vector<16x64xf32>,
    } else {
    }
    %c0_i32_11 = arith.constant 0 : i32
    %17 = arith.cmpi ne, %arg1, %c0_i32_11 : i32
    %18 = arith.extui %17 : i1 to i32
    %c0_i32_12 = arith.constant 0 : i32
    %19 = arith.cmpi ne, %18, %c0_i32_12 : i32
    scf.if %19 {
      %c0_15 = arith.constant 0 : index
      %c0_16 = arith.constant 0 : index
      %23 = vector.load %arg7[%c0_15, %c0_16] : memref<16x64xf32, #tpu.memory_space<vmem>>, vector<16x64xf32>
      %24 = arith.addf %23, %13 : vector<16x64xf32>
      %c0_17 = arith.constant 0 : index
      %c0_18 = arith.constant 0 : index
      %25 = vector.load %arg7[%c0_17, %c0_18] : memref<16x64xf32, #tpu.memory_space<vmem>>, vector<16x64xf32>
      tpu.vector_store %arg7[%c0_17, %c0_18], %24 {strides = array<i32>} : memref<16x64xf32, #tpu.memory_space<vmem>>, vector<16x64xf32>,
    } else {
    }
    %c0_i32_13 = arith.constant 0 : i32
    %20 = arith.cmpi eq, %arg1, %c0_i32_13 : i32
    %21 = arith.extui %20 : i1 to i32
    %c0_i32_14 = arith.constant 0 : i32
    %22 = arith.cmpi ne, %21, %c0_i32_14 : i32
    scf.if %22 {
      %c0_15 = arith.constant 0 : index
      %c0_16 = arith.constant 0 : index
      %23 = vector.load %arg7[%c0_15, %c0_16] : memref<16x64xf32, #tpu.memory_space<vmem>>, vector<16x64xf32>
      %c0_17 = arith.constant 0 : index
      %c0_18 = arith.constant 0 : index
      %24 = vector.load %arg6[%c0_17, %c0_18] : memref<16x64xf32, #tpu.memory_space<vmem>>, vector<16x64xf32>
      tpu.vector_store %arg6[%c0_17, %c0_18], %23 {strides = array<i32>} : memref<16x64xf32, #tpu.memory_space<vmem>>, vector<16x64xf32>,
    } else {
    }
    return
  }
  func.func @transform_0(%arg0: i32, %arg1: i32) -> (i32, i32) {
    %c0_i32 = arith.constant 0 : i32
    %c0_i32_0 = arith.constant 0 : i32
    return %arg0, %c0_i32 : i32, i32
  }
  func.func @transform_1(%arg0: i32, %arg1: i32) -> (i32, i32) {
    %c0_i32 = arith.constant 0 : i32
    %c0_i32_0 = arith.constant 0 : i32
    return %c0_i32, %arg1 : i32, i32
  }
  func.func @transform_2(%arg0: i32, %arg1: i32) -> (i32, i32) {
    %c0_i32 = arith.constant 0 : i32
    %c0_i32_0 = arith.constant 0 : i32
    return %c0_i32, %arg1 : i32, i32
  }
  func.func @transform_3(%arg0: i32, %arg1: i32) -> (i32, i32) {
    %c0_i32 = arith.constant 0 : i32
    %c0_i32_0 = arith.constant 0 : i32
    return %arg1, %c0_i32 : i32, i32
  }
  func.func @transform_4(%arg0: i32, %arg1: i32) -> (i32, i32) {
    %c0_i32 = arith.constant 0 : i32
    %c0_i32_0 = arith.constant 0 : i32
    return %arg0, %c0_i32 : i32, i32
  }
}

</mosaic_0001>

<llo_original>
// kernel: mlp_forward.1
$region0: #{mlp_forward.1}
  #allocation0 [shape = 'u32[]', space=smem, size = 0x4, offset = 0x4, fixed_abs, tag = 'smem constant byte address 0x4 - core index']
  #allocation1 [shape = 'u32[72,128]{1,0:T(1,128)}', space=vmem, size = 0x9000, scoped, tag = 'internal scratch']
  #allocation2 [shape = 'f32[16,64]{1,0:T(8,128)}', space=vmem, size = 0x2000, scoped, tag = 'scratch operand']
  %s0 = inlined_call_operand.vmem [shape: f32[16,64], index: 0, kind: input, shape index: {}]
  %s1 = inlined_call_operand.vmem [shape: f32[64,256], index: 1, kind: input, shape index: {}]
  %s2 = inlined_call_operand.vmem [shape: f32[64,256], index: 2, kind: input, shape index: {}]
  %s3 = inlined_call_operand.vmem [shape: f32[256,64], index: 3, kind: input, shape index: {}]
  %s4 = inlined_call_operand.hbm [shape: f32[16,64], index: 4, kind: output, shape index: {}]
  %s5 = sld [smem:[#allocation0]]
  $region38: #{mlp_forward.1} parent=0
    _
  %s7 = ssub.s32 1, %s5
  %s8 = scalar_select 0, %s7, %s5
  $region1: #{mlp_forward.1} parent=0
    #allocation3 [shape = 'u8[8192]{0}', space=vmem, size = 0x2000, scoped, tag = 'output window, operand 0, single buffered']
    #allocation4 [shape = 's32[1]{0}', space=sflag, size = 0x4, scoped, tag = 'scoped memory for mlp_forward.1']
    %9 = vsyncpa [#allocation4], 0
    // Predicated region
    $region2: #{mlp_forward.1} parent=1 // pred_check
      _
    $region3: #{mlp_forward.1} parent=1 // pred_check_branch
      %11 = sbr.rel (0) target = $region5
    $region4: #{mlp_forward.1} parent=1 // pred_region
      _
    $region5: #{mlp_forward.1} parent=1 // pred_fallthru
      _
    // Predicated region
    $region6: #{mlp_forward.1} parent=1 // pred_check
      _
    $region7: #{mlp_forward.1} parent=1 // pred_check_branch
      %13 = sbr.rel (0) target = $region9
    $region8: #{mlp_forward.1} parent=1 // pred_region
      _
    $region9: #{mlp_forward.1} parent=1 // pred_fallthru
      _
    // Predicated region
    $region10: #{mlp_forward.1} parent=1 // pred_check
      _
    $region11: #{mlp_forward.1} parent=1 // pred_check_branch
      %15 = sbr.rel (0) target = $region13
    $region12: #{mlp_forward.1} parent=1 // pred_region
      _
    $region13: #{mlp_forward.1} parent=1 // pred_fallthru
      _
    // Predicated region
    $region14: #{mlp_forward.1} parent=1 // pred_check
      _
    $region15: #{mlp_forward.1} parent=1 // pred_check_branch
      %17 = sbr.rel (0) target = $region17
    $region16: #{mlp_forward.1} parent=1 // pred_region
      _
    $region17: #{mlp_forward.1} parent=1 // pred_fallthru
      _
    %v18 = vld [vmem:[%s0] sm:$0xff]
    %v19 = vld [vmem:[%s0 + $0x8] sm:$0xff]
    %v20 = vld [vmem:[%s1] sm:$0xff]
    %v21 = vld [vmem:[%s1 + $0x8] sm:$0xff]
    %v22 = vld [vmem:[%s1 + $0x10] sm:$0xff]
    %v23 = vld [vmem:[%s1 + $0x18] sm:$0xff]
    %v24 = vld [vmem:[%s1 + $0x20] sm:$0xff]
    %v25 = vld [vmem:[%s1 + $0x28] sm:$0xff]
    %v26 = vld [vmem:[%s1 + $0x30] sm:$0xff]
    %v27 = vld [vmem:[%s1 + $0x38] sm:$0xff]
    %v28 = vld [vmem:[%s1 + $0x40] sm:$0xff]
    %v29 = vld [vmem:[%s1 + $0x48] sm:$0xff]
    %v30 = vld [vmem:[%s1 + $0x50] sm:$0xff]
    %v31 = vld [vmem:[%s1 + $0x58] sm:$0xff]
    %v32 = vld [vmem:[%s1 + $0x60] sm:$0xff]
    %v33 = vld [vmem:[%s1 + $0x68] sm:$0xff]
    %v34 = vld [vmem:[%s1 + $0x70] sm:$0xff]
    %v35 = vld [vmem:[%s1 + $0x78] sm:$0xff]
    %vm36 = vcmask 523264
    %v38 = vsel %vm36, %v18, 0
    %v41 = vsel %vm36, %v19, 0
    %43 = vmatpush.msra.mxu0 0.0
    %44 = vmatpush.msra.mxu0 0.0
    %45 = vmatpush.msra.mxu0 0.0
    %46 = vmatpush.msra.mxu0 0.0
    %47 = vmatpush.msra.mxu0 0.0
    %48 = vmatpush.msra.mxu0 0.0
    %49 = vmatpush.msra.mxu0 0.0
    %50 = vmatpush.msra.mxu0 0.0
    %51 = vmatpush.msra.mxu0 %v34
    %52 = vmatpush.msra.mxu0 %v32
    %53 = vmatpush.msra.mxu0 %v30
    %54 = vmatpush.msra.mxu0 %v28
    %55 = vmatpush.msra.mxu0 %v26
    %56 = vmatpush.msra.mxu0 %v24
    %57 = vmatpush.msra.mxu0 %v22
    %58 = vmatpush.msra.mxu0 %v20
    %59 = vmatmul.f32.gmra.mxu0 %v38
    %v60 = vpop.f32.mrf.mxu0
    %v61 = vadd.f32 0.0, %v60
    %62 = vmatmul.f32.gmra.mxu0 %v41
    %v63 = vpop.f32.mrf.mxu0
    %v64 = vadd.f32 0.0, %v63
    %65 = vdwg.mxu0
    %66 = vmatpush.msra.mxu0 0.0
    %67 = vmatpush.msra.mxu0 0.0
    %68 = vmatpush.msra.mxu0 0.0
    %69 = vmatpush.msra.mxu0 0.0
    %70 = vmatpush.msra.mxu0 0.0
    %71 = vmatpush.msra.mxu0 0.0
    %72 = vmatpush.msra.mxu0 0.0
    %73 = vmatpush.msra.mxu0 0.0
    %74 = vmatpush.msra.mxu0 %v35
    %75 = vmatpush.msra.mxu0 %v33
    %76 = vmatpush.msra.mxu0 %v31
    %77 = vmatpush.msra.mxu0 %v29
    %78 = vmatpush.msra.mxu0 %v27
    %79 = vmatpush.msra.mxu0 %v25
    %80 = vmatpush.msra.mxu0 %v23
    %81 = vmatpush.msra.mxu0 %v21
    %82 = vmatmul.f32.gmra.mxu0 %v38
    %v83 = vpop.f32.mrf.mxu0
    %v84 = vadd.f32 0.0, %v83
    %85 = vmatmul.f32.gmra.mxu0 %v41
    %v86 = vpop.f32.mrf.mxu0
    %v87 = vadd.f32 0.0, %v86
    %88 = vdwg.mxu0
    %v89 = vld [vmem:[%s2] sm:$0xff]
    %v90 = vld [vmem:[%s2 + $0x8] sm:$0xff]
    %v91 = vld [vmem:[%s2 + $0x10] sm:$0xff]
    %v92 = vld [vmem:[%s2 + $0x18] sm:$0xff]
    %v93 = vld [vmem:[%s2 + $0x20] sm:$0xff]
    %v94 = vld [vmem:[%s2 + $0x28] sm:$0xff]
    %v95 = vld [vmem:[%s2 + $0x30] sm:$0xff]
    %v96 = vld [vmem:[%s2 + $0x38] sm:$0xff]
    %v97 = vld [vmem:[%s2 + $0x40] sm:$0xff]
    %v98 = vld [vmem:[%s2 + $0x48] sm:$0xff]
    %v99 = vld [vmem:[%s2 + $0x50] sm:$0xff]
    %v100 = vld [vmem:[%s2 + $0x58] sm:$0xff]
    %v101 = vld [vmem:[%s2 + $0x60] sm:$0xff]
    %v102 = vld [vmem:[%s2 + $0x68] sm:$0xff]
    %v103 = vld [vmem:[%s2 + $0x70] sm:$0xff]
    %v104 = vld [vmem:[%s2 + $0x78] sm:$0xff]
    %105 = vmatpush.msra.mxu0 0.0
    %106 = vmatpush.msra.mxu0 0.0
    %107 = vmatpush.msra.mxu0 0.0
    %108 = vmatpush.msra.mxu0 0.0
    %109 = vmatpush.msra.mxu0 0.0
    %110 = vmatpush.msra.mxu0 0.0
    %111 = vmatpush.msra.mxu0 0.0
    %112 = vmatpush.msra.mxu0 0.0
    %113 = vmatpush.msra.mxu0 %v103
    %114 = vmatpush.msra.mxu0 %v101
    %115 = vmatpush.msra.mxu0 %v99
    %116 = vmatpush.msra.mxu0 %v97
    %117 = vmatpush.msra.mxu0 %v95
    %118 = vmatpush.msra.mxu0 %v93
    %119 = vmatpush.msra.mxu0 %v91
    %120 = vmatpush.msra.mxu0 %v89
    %121 = vmatmul.f32.gmra.mxu0 %v38
    %v122 = vpop.f32.mrf.mxu0
    %v123 = vadd.f32 0.0, %v122
    %124 = vmatmul.f32.gmra.mxu0 %v41
    %v125 = vpop.f32.mrf.mxu0
    %v126 = vadd.f32 0.0, %v125
    %127 = vdwg.mxu0
    %128 = vmatpush.msra.mxu0 0.0
    %129 = vmatpush.msra.mxu0 0.0
    %130 = vmatpush.msra.mxu0 0.0
    %131 = vmatpush.msra.mxu0 0.0
    %132 = vmatpush.msra.mxu0 0.0
    %133 = vmatpush.msra.mxu0 0.0
    %134 = vmatpush.msra.mxu0 0.0
    %135 = vmatpush.msra.mxu0 0.0
    %136 = vmatpush.msra.mxu0 %v104
    %137 = vmatpush.msra.mxu0 %v102
    %138 = vmatpush.msra.mxu0 %v100
    %139 = vmatpush.msra.mxu0 %v98
    %140 = vmatpush.msra.mxu0 %v96
    %141 = vmatpush.msra.mxu0 %v94
    %142 = vmatpush.msra.mxu0 %v92
    %143 = vmatpush.msra.mxu0 %v90
    %144 = vmatmul.f32.gmra.mxu0 %v38
    %v145 = vpop.f32.mrf.mxu0
    %v146 = vadd.f32 0.0, %v145
    %147 = vmatmul.f32.gmra.mxu0 %v41
    %v148 = vpop.f32.mrf.mxu0
    %v149 = vadd.f32 0.0, %v148
    %150 = vdwg.mxu0
    %v151 = vxor.u32 %v61, 2147483648
    %v152 = vxor.u32 %v84, 2147483648
    %v153 = vxor.u32 %v64, 2147483648
    %v154 = vxor.u32 %v87, 2147483648
    %v155 = vmul.f32 %v151, 1.442695
    %v156 = vpow.pop %v155
    %v157 = vmul.f32 %v152, 1.442695
    %v158 = vpow.pop %v157
    %v159 = vmul.f32 %v153, 1.442695
    %v160 = vpow.pop %v159
    %v161 = vmul.f32 %v154, 1.442695
    %v162 = vpow.pop %v161
    %v163 = vadd.f32 %v156, 1.0
    %v164 = vadd.f32 %v158, 1.0
    %v165 = vadd.f32 %v160, 1.0
    %v166 = vadd.f32 %v162, 1.0
    %v167 = vrcp.pop %v163
    %v168 = vmul.f32 %v163, %v167
    %v169 = vsub.f32 1.0, %v168
    %v170 = vmul.f32 %v167, %v169
    %v171 = vadd.f32 %v167, %v170
    %vm172 = vweird.f32 %v163
    %vm173 = vweird.f32 %v167
    %vm174 = vmor %vm172, %vm173
    %v175 = vsel %vm174, %v167, %v171
    %v176 = vand.u32 2147483647, %v163
    %vm177 = vcmp.eq.f32.partialorder %v176, 8.507059e+37
    %v178 = vand.u32 %v163, 2147483648
    %v179 = vor.u32 1.1754944e-38, %v178
    %v180 = vsel %vm177, %v179, %v175
    %v181 = vmul.f32 1.0, %v180
    %v182 = vrcp.pop %v164
    %v183 = vmul.f32 %v164, %v182
    %v184 = vsub.f32 1.0, %v183
    %v185 = vmul.f32 %v182, %v184
    %v186 = vadd.f32 %v182, %v185
    %vm187 = vweird.f32 %v164
    %vm188 = vweird.f32 %v182
    %vm189 = vmor %vm187, %vm188
    %v190 = vsel %vm189, %v182, %v186
    %v191 = vand.u32 2147483647, %v164
    %vm192 = vcmp.eq.f32.partialorder %v191, 8.507059e+37
    %v193 = vand.u32 %v164, 2147483648
    %v194 = vor.u32 1.1754944e-38, %v193
    %v195 = vsel %vm192, %v194, %v190
    %v196 = vmul.f32 1.0, %v195
    %v197 = vrcp.pop %v165
    %v198 = vmul.f32 %v165, %v197
    %v199 = vsub.f32 1.0, %v198
    %v200 = vmul.f32 %v197, %v199
    %v201 = vadd.f32 %v197, %v200
    %vm202 = vweird.f32 %v165
    %vm203 = vweird.f32 %v197
    %vm204 = vmor %vm202, %vm203
    %v205 = vsel %vm204, %v197, %v201
    %v206 = vand.u32 2147483647, %v165
    %vm207 = vcmp.eq.f32.partialorder %v206, 8.507059e+37
    %v208 = vand.u32 %v165, 2147483648
    %v209 = vor.u32 1.1754944e-38, %v208
    %v210 = vsel %vm207, %v209, %v205
    %v211 = vmul.f32 1.0, %v210
    %v212 = vrcp.pop %v166
    %v213 = vmul.f32 %v166, %v212
    %v214 = vsub.f32 1.0, %v213
    %v215 = vmul.f32 %v212, %v214
    %v216 = vadd.f32 %v212, %v215
    %vm217 = vweird.f32 %v166
    %vm218 = vweird.f32 %v212
    %vm219 = vmor %vm217, %vm218
    %v220 = vsel %vm219, %v212, %v216
    %v221 = vand.u32 2147483647, %v166
    %vm222 = vcmp.eq.f32.partialorder %v221, 8.507059e+37
    %v223 = vand.u32 %v166, 2147483648
    %v224 = vor.u32 1.1754944e-38, %v223
    %v225 = vsel %vm222, %v224, %v220
    %v226 = vmul.f32 1.0, %v225
    %v227 = vmul.f32 %v61, %v181
    %v228 = vmul.f32 %v84, %v196
    %v229 = vmul.f32 %v64, %v211
    %v230 = vmul.f32 %v87, %v226
    %v231 = vmul.f32 %v227, %v123
    %v232 = vmul.f32 %v228, %v146
    %v233 = vmul.f32 %v229, %v126
    %v234 = vmul.f32 %v230, %v149
    %v235 = vld [vmem:[%s3] sm:$0xff]
    %v236 = vld [vmem:[%s3 + $0x8] sm:$0xff]
    %v237 = vld [vmem:[%s3 + $0x10] sm:$0xff]
    %v238 = vld [vmem:[%s3 + $0x18] sm:$0xff]
    %v239 = vld [vmem:[%s3 + $0x20] sm:$0xff]
    %v240 = vld [vmem:[%s3 + $0x28] sm:$0xff]
    %v241 = vld [vmem:[%s3 + $0x30] sm:$0xff]
    %v242 = vld [vmem:[%s3 + $0x38] sm:$0xff]
    %v243 = vld [vmem:[%s3 + $0x40] sm:$0xff]
    %v244 = vld [vmem:[%s3 + $0x48] sm:$0xff]
    %v245 = vld [vmem:[%s3 + $0x50] sm:$0xff]
    %v246 = vld [vmem:[%s3 + $0x58] sm:$0xff]
    %v247 = vld [vmem:[%s3 + $0x60] sm:$0xff]
    %v248 = vld [vmem:[%s3 + $0x68] sm:$0xff]
    %v249 = vld [vmem:[%s3 + $0x70] sm:$0xff]
    %v250 = vld [vmem:[%s3 + $0x78] sm:$0xff]
    %v251 = vld [vmem:[%s3 + $0x80] sm:$0xff]
    %v252 = vld [vmem:[%s3 + $0x88] sm:$0xff]
    %v253 = vld [vmem:[%s3 + $0x90] sm:$0xff]
    %v254 = vld [vmem:[%s3 + $0x98] sm:$0xff]
    %v255 = vld [vmem:[%s3 + $0xa0] sm:$0xff]
    %v256 = vld [vmem:[%s3 + $0xa8] sm:$0xff]
    %v257 = vld [vmem:[%s3 + $0xb0] sm:$0xff]
    %v258 = vld [vmem:[%s3 + $0xb8] sm:$0xff]
    %v259 = vld [vmem:[%s3 + $0xc0] sm:$0xff]
    %v260 = vld [vmem:[%s3 + $0xc8] sm:$0xff]
    %v261 = vld [vmem:[%s3 + $0xd0] sm:$0xff]
    %v262 = vld [vmem:[%s3 + $0xd8] sm:$0xff]
    %v263 = vld [vmem:[%s3 + $0xe0] sm:$0xff]
    %v264 = vld [vmem:[%s3 + $0xe8] sm:$0xff]
    %v265 = vld [vmem:[%s3 + $0xf0] sm:$0xff]
    %v266 = vld [vmem:[%s3 + $0xf8] sm:$0xff]
    %267 = vmatpush.msra.mxu0 %v250
    %268 = vmatpush.msra.mxu0 %v249
    %269 = vmatpush.msra.mxu0 %v248
    %270 = vmatpush.msra.mxu0 %v247
    %271 = vmatpush.msra.mxu0 %v246
    %272 = vmatpush.msra.mxu0 %v245
    %273 = vmatpush.msra.mxu0 %v244
    %274 = vmatpush.msra.mxu0 %v243
    %275 = vmatpush.msra.mxu0 %v242
    %276 = vmatpush.msra.mxu0 %v241
    %277 = vmatpush.msra.mxu0 %v240
    %278 = vmatpush.msra.mxu0 %v239
    %279 = vmatpush.msra.mxu0 %v238
    %280 = vmatpush.msra.mxu0 %v237
    %281 = vmatpush.msra.mxu0 %v236
    %282 = vmatpush.msra.mxu0 %v235
    %283 = vmatmul.f32.gmra.mxu0 %v231
    %v284 = vpop.f32.mrf.mxu0
    %v285 = vadd.f32 0.0, %v284
    %286 = vmatmul.f32.gmra.mxu0 %v233
    %v287 = vpop.f32.mrf.mxu0
    %v288 = vadd.f32 0.0, %v287
    %289 = vdwg.mxu0
    %290 = vmatpush.msra.mxu0 %v266
    %291 = vmatpush.msra.mxu0 %v265
    %292 = vmatpush.msra.mxu0 %v264
    %293 = vmatpush.msra.mxu0 %v263
    %294 = vmatpush.msra.mxu0 %v262
    %295 = vmatpush.msra.mxu0 %v261
    %296 = vmatpush.msra.mxu0 %v260
    %297 = vmatpush.msra.mxu0 %v259
    %298 = vmatpush.msra.mxu0 %v258
    %299 = vmatpush.msra.mxu0 %v257
    %300 = vmatpush.msra.mxu0 %v256
    %301 = vmatpush.msra.mxu0 %v255
    %302 = vmatpush.msra.mxu0 %v254
    %303 = vmatpush.msra.mxu0 %v253
    %304 = vmatpush.msra.mxu0 %v252
    %305 = vmatpush.msra.mxu0 %v251
    %306 = vmatmul.f32.gmra.mxu0 %v232
    %v307 = vpop.f32.mrf.mxu0
    %v308 = vadd.f32 %v285, %v307
    %309 = vmatmul.f32.gmra.mxu0 %v234
    %v310 = vpop.f32.mrf.mxu0
    %v311 = vadd.f32 %v288, %v310
    %312 = vdwg.mxu0
    %p313 = scmp.eq.s32.totalorder 0, 0
    // Predicated region
    $region18: #{mlp_forward.1} parent=1 // pred_check
      %p314 = pneg %p313
    $region19: #{mlp_forward.1} parent=1 // pred_check_branch
      %316 = sbr.rel (%p314) target = $region21
    $region20: #{mlp_forward.1} parent=1 // pred_region
      %317 = vst.msk [vmem:[#allocation2] sm:$0xff] %vm36, %v308
      %318 = vst.msk [vmem:[#allocation2 + $0x8] sm:$0xff] %vm36, %v311
    $region21: #{mlp_forward.1} parent=1 // pred_fallthru
      _
    %p319 = scmp.ne.s32.totalorder 0, 0
    // Predicated region
    $region22: #{mlp_forward.1} parent=1 // pred_check
      %p320 = pneg %p319
    $region23: #{mlp_forward.1} parent=1 // pred_check_branch
      %322 = sbr.rel (%p320) target = $region25
    $region24: #{mlp_forward.1} parent=1 // pred_region
      %v323 = vld [vmem:[#allocation2] sm:$0xff]
      %v324 = vld [vmem:[#allocation2 + $0x8] sm:$0xff]
      %v325 = vadd.f32 %v323, %v308
      %v326 = vadd.f32 %v324, %v311
      %327 = vst.msk [vmem:[#allocation2] sm:$0xff] %vm36, %v325
      %328 = vst.msk [vmem:[#allocation2 + $0x8] sm:$0xff] %vm36, %v326
    $region25: #{mlp_forward.1} parent=1 // pred_fallthru
      _
    // Predicated region
    $region26: #{mlp_forward.1} parent=1 // pred_check
      %p329 = pneg %p313
    $region27: #{mlp_forward.1} parent=1 // pred_check_branch
      %331 = sbr.rel (%p329) target = $region29
    $region28: #{mlp_forward.1} parent=1 // pred_region
      %v332 = vld [vmem:[#allocation2] sm:$0xff]
      %v333 = vld [vmem:[#allocation2 + $0x8] sm:$0xff]
      %334 = vst.msk [vmem:[#allocation3] sm:$0xff] %vm36, %v332
      %335 = vst.msk [vmem:[#allocation3 + $0x8] sm:$0xff] %vm36, %v333
    $region29: #{mlp_forward.1} parent=1 // pred_fallthru
      _
    // Predicated region
    $region30: #{mlp_forward.1} parent=1 // pred_check
      _
    $region31: #{mlp_forward.1} parent=1 // pred_check_branch
      %337 = sbr.rel (0) target = $region33
    $region32: #{mlp_forward.1} parent=1 // pred_region
      %339 = vsyncadd [#allocation4], 0
      %s340 = sshll.u32 [#allocation3], 4
      %s341 = int_to_ptr.vmem [resolvable:$true] %s340
      %s342 = sshll.u32 %s4, 4
      %s343 = int_to_ptr.hbm [resolvable:$true] %s342
      %348 = dma.vmem_to_hbm [thread:$0]  %s341, 256, %s343, [#allocation4], 128, 128, 8
    $region33: #{mlp_forward.1} parent=1 // pred_fallthru
      _
    // Predicated region
    $region34: #{mlp_forward.1} parent=1 // pred_check
      _
    $region35: #{mlp_forward.1} parent=1 // pred_check_branch
      %350 = sbr.rel (0) target = $region37
    $region36: #{mlp_forward.1} parent=1 // pred_region
      %352 = dma.done [#allocation4], 256
    $region37: #{mlp_forward.1} parent=1 // pred_fallthru
      _
    %353 = vsyncpa [#allocation4], 1

</llo_original>
